<compile_context>
chip_gen: v7x
topology: tpu7x:2x2x1
jax: 0.10.0
libtpu: 0.0.40
codegen_flags: <defaults>
</compile_context>

<pallas_src>
import math
import functools

import jax
import jax.numpy as jnp
from jax.experimental import pallas as pl
from jax.experimental.pallas import tpu as pltpu


_LANE = 128


def _round_up(a, b):
    return (a + b - 1) // b * b


def _min_sublane(dtype):
    # Minimum sublane tile for packed dtypes: 8 (f32), 16 (bf16), 32 (int8/fp8).
    size = jnp.dtype(dtype).itemsize
    return {4: 8, 2: 16, 1: 32}.get(size, 8)


def _vmem_capacity_bytes():
    try:
        info = pltpu.get_tpu_info()
        cap = getattr(info, "vmem_capacity_bytes", None)
        if cap:
            return int(cap)
    except Exception:
        pass
    return 64 << 20  # conservative fallback (v7x per-core VMEM)


def _gelu_sigmoid(y):
    # GELU (sigmoid approximation), same formula as the Triton kernel:
    #   y * (1 / (1 + exp(-1.702 * y)))
    # exp and the approximate reciprocal both go to the EUP slot, leaving the
    # VPU free during the epilogue.
    z = jnp.exp(-1.702 * y)
    return y * pl.reciprocal(1.0 + z, approx=True)


# --------------------------------------------------------------------------
# Kernels
# --------------------------------------------------------------------------
def _single_block_kernel(x_ref, wt_ref, b_ref, o_ref):
    # Whole problem resident in VMEM, grid=().
    y = jnp.dot(x_ref[...], wt_ref[...], preferred_element_type=jnp.float32)
    y = y + b_ref[...]
    o_ref[...] = _gelu_sigmoid(y).astype(o_ref.dtype)


def _tiled_noacc_kernel(x_ref, wt_ref, b_ref, o_ref):
    # grid = (M/tm, N/tn); entire K resident per step -> no accumulator scratch.
    y = jnp.dot(x_ref[...], wt_ref[...], preferred_element_type=jnp.float32)
    y = y + b_ref[...]
    o_ref[...] = _gelu_sigmoid(y).astype(o_ref.dtype)


def _tiled_acc_kernel(x_ref, wt_ref, b_ref, o_ref, acc_ref):
    # grid = (M/tm, N/tn, K/tk), K innermost ("arbitrary"), f32 accumulator.
    k = pl.program_id(2)

    @pl.when(k == 0)
    def _():
        acc_ref[...] = jnp.zeros_like(acc_ref)

    acc_ref[...] += jnp.dot(
        x_ref[...], wt_ref[...], preferred_element_type=jnp.float32
    )

    @pl.when(k == pl.num_programs(2) - 1)
    def _():
        y = acc_ref[...] + b_ref[...]  # broadcast (1, tn) over rows
        o_ref[...] = _gelu_sigmoid(y).astype(o_ref.dtype)


# --------------------------------------------------------------------------
# Wrapper helpers
# --------------------------------------------------------------------------
def _pick_block(total, target):
    """Largest multiple of 128 dividing `total` that is <= max(target, 128),
    or `total` itself if it already fits under the target."""
    target = max(target, _LANE)
    if total <= target:
        return total
    d = (target // _LANE) * _LANE
    while d > _LANE:
        if total % d == 0:
            return d
        d -= _LANE
    return _LANE


def prepare_params(weight, bias):
    """One-time weight prep: transpose nn.Linear's (N, K) weight to (K, N) and
    zero-pad K/N up to lane multiples, so no per-call transpose/pad of the
    (large) weight is ever paid again.  Returns (w_t, bias2d, out_features)."""
    N, K = weight.shape
    Kp, Np = _round_up(K, _LANE), _round_up(N, _LANE)
    w_t = weight.T
    if (Kp, Np) != (K, N):
        w_t = jnp.pad(w_t, ((0, Kp - K), (0, Np - N)))
    b2 = bias.reshape(1, N)
    if Np != N:
        b2 = jnp.pad(b2, ((0, 0), (0, Np - N)))
    return jnp.asarray(w_t), jnp.asarray(b2), N


@functools.partial(
    jax.jit, static_argnames=("out_features", "tm", "tn", "tk", "force_tiled")
)
def fused_linear_gelu_prepacked(
    x, w_t, bias2d, *, out_features, tm=None, tn=None, tk=None, force_tiled=False
):
    """out = gelu_sigmoid(x @ weight.T + bias), with weight pre-transposed/padded
    to (Kp, Np) by `prepare_params`."""
    M, K = x.shape
    Kp, Np = w_t.shape
    N = out_features
    assert K <= Kp and N <= Np

    dt = x.dtype
    sub = _min_sublane(dt)
    vmem_cap = _vmem_capacity_bytes()

    # Pad x's K to the pre-padded weight's K (cheap: activations only).
    xp = x if K == Kp else jnp.pad(x, ((0, 0), (0, Kp - K)))

    elt = jnp.dtype(dt).itemsize
    total_bytes = elt * (M * Kp + M * Np) + 4 * (Kp * Np + Np)
    cost = pl.CostEstimate(
        flops=2 * M * N * K,
        transcendentals=2 * M * N,  # exp + approx reciprocal
        bytes_accessed=total_bytes,
    )

    # ---- gridless fast path: whole problem resident in VMEM ----------------
    # Keep the cutoff low on small-VMEM / dual-core chips (v7x) so medium
    # shapes still get a parallel grid across both TensorCores.
    fast_cutoff = (6 << 20) if vmem_cap <= (64 << 20) else (24 << 20)
    if (not force_tiled) and total_bytes <= fast_cutoff:
        out = pl.pallas_call(
            _single_block_kernel,
            out_shape=jax.ShapeDtypeStruct((M, Np), dt),
            in_specs=[pl.BlockSpec(memory_space=pltpu.MemorySpace.VMEM)] * 3,
            out_specs=pl.BlockSpec(memory_space=pltpu.MemorySpace.VMEM),
            compiler_params=pltpu.CompilerParams(
                vmem_limit_bytes=int(
                    min(vmem_cap * 0.85, max(2 * total_bytes, 16 << 20))
                ),
            ),
            cost_estimate=cost,
        )(xp, w_t, bias2d)
        return out[:, :N] if Np != N else out

    # ---- tiled path ---------------------------------------------------------
    tm_t = 256 if tm is None else tm
    tn_t = 512 if tn is None else tn
    tk_t = 2048 if tk is None else tk

    tm_c = min(_round_up(tm_t, sub), _round_up(M, sub))
    tn_c = _pick_block(Np, tn_t)
    tk_c = _pick_block(Kp, tk_t)

    def tile_bytes(a, b, c):
        # 2x double-buffered x & w tiles, 2x output tiles, 1x f32 accumulator,
        # double-buffered bias row.
        return 4 * (2 * (a * c + c * b) + 3 * a * b + 2 * b)

    budget = int(vmem_cap * 0.6)
    while tile_bytes(tm_c, tn_c, tk_c) > budget:
        if tk_c > _LANE:
            tk_c = _pick_block(Kp, max(_LANE, tk_c // 2))
        elif tn_c > _LANE:
            tn_c = _pick_block(Np, max(_LANE, tn_c // 2))
        elif tm_c > sub:
            tm_c = max(sub, tm_c // 2)
        else:
            break

    Mp = _round_up(M, tm_c)
    if Mp != M:
        xp = jnp.pad(xp, ((0, Mp - M), (0, 0)))

    vmem_limit = int(
        min(vmem_cap * 0.85, max(tile_bytes(tm_c, tn_c, tk_c) + (4 << 20), 16 << 20))
    )
    grid_m, grid_n, grid_k = Mp // tm_c, Np // tn_c, Kp // tk_c

    if grid_k == 1:
        # Whole K resident each step: scratch-free kernel, no pl.when.
        out = pl.pallas_call(
            _tiled_noacc_kernel,
            out_shape=jax.ShapeDtypeStruct((Mp, Np), dt),
            grid=(grid_m, grid_n),
            in_specs=[
                pl.BlockSpec((tm_c, tk_c), lambda i, j: (i, 0)),   # x
                pl.BlockSpec((tk_c, tn_c), lambda i, j: (0, j)),   # weight.T
                pl.BlockSpec((1, tn_c), lambda i, j: (0, j)),      # bias
            ],
            out_specs=pl.BlockSpec((tm_c, tn_c), lambda i, j: (i, j)),
            compiler_params=pltpu.CompilerParams(
                dimension_semantics=("parallel", "parallel"),
                vmem_limit_bytes=vmem_limit,
            ),
            cost_estimate=cost,
        )(xp, w_t, bias2d)
    else:
        out = pl.pallas_call(
            _tiled_acc_kernel,
            out_shape=jax.ShapeDtypeStruct((Mp, Np), dt),
            grid=(grid_m, grid_n, grid_k),
            in_specs=[
                pl.BlockSpec((tm_c, tk_c), lambda i, j, k: (i, k)),   # x
                pl.BlockSpec((tk_c, tn_c), lambda i, j, k: (k, j)),   # weight.T
                pl.BlockSpec((1, tn_c), lambda i, j, k: (0, j)),      # bias
            ],
            out_specs=pl.BlockSpec((tm_c, tn_c), lambda i, j, k: (i, j)),
            scratch_shapes=[pltpu.VMEM((tm_c, tn_c), jnp.float32)],
            compiler_params=pltpu.CompilerParams(
                dimension_semantics=("parallel", "parallel", "arbitrary"),
                vmem_limit_bytes=vmem_limit,
            ),
            cost_estimate=cost,
        )(xp, w_t, bias2d)

    if (Mp, Np) != (M, N):
        out = out[:M, :N]
    return out


def fused_linear_gelu(x, weight, bias, **kwargs):
    """Convenience wrapper taking the nn.Linear-layout weight (N, K); for best
    performance call `prepare_params` once and use `fused_linear_gelu_prepacked`."""
    w_t, b2, n_out = prepare_params(weight, bias)
    return fused_linear_gelu_prepacked(x, w_t, b2, out_features=n_out, **kwargs)


# TODO(synk): optionally cast activations/weights to bfloat16 for the MXU on
# v6e/v7x (keeping f32 accumulation) when the caller tolerates reduced precision.


def init_params(key, input_size, output_size, divisor):
    """Mirror nn.Linear defaults (kaiming_uniform a=sqrt(5) -> bound=1/sqrt(fan_in)
    for weight; uniform(-bound, bound) for bias), then divide by `divisor`."""
    kw, kb = jax.random.split(key)
    bound = 1.0 / math.sqrt(input_size)
    weight = jax.random.uniform(
        kw, (output_size, input_size), jnp.float32, minval=-bound, maxval=bound
    )
    bias = jax.random.uniform(
        kb, (output_size,), jnp.float32, minval=-bound, maxval=bound
    )
    return weight / divisor, bias / divisor


if __name__ == "__main__":
    key = jax.random.PRNGKey(0)
    kx, kp, kx2, kp2 = jax.random.split(key, 4)

    # Small shapes consistent with the module's Triton launch parameters.
    batch_size, input_size, output_size, divisor = 16, 128, 256, 2.0

    weight, bias = init_params(kp, input_size, output_size, divisor)
    x = jax.random.normal(kx, (batch_size, input_size), jnp.float32)

    # One-time weight prep (transpose + pad) — never paid per forward call.
    w_t, bias2d, n_out = prepare_params(weight, bias)

    def ref_fn(xv, wv, bv):
        y = xv @ wv.T + bv
        return y * (1.0 / (1.0 + jnp.exp(-1.702 * y)))

    ref = ref_fn(x, weight, bias)

    # 1) Gridless fast path (small problem, fully VMEM-resident).
    out = jax.block_until_ready(
        fused_linear_gelu_prepacked(x, w_t, bias2d, out_features=n_out)
    )
    assert out.shape == (batch_size, output_size)
    assert jnp.allclose(out, ref, atol=5e-3, rtol=5e-3), "mismatch (fast path)"

    # 2) Tiled path, scratch-free variant (grid over M,N; whole K per block).
    out_t = jax.block_until_ready(
        fused_linear_gelu_prepacked(
            x, w_t, bias2d, out_features=n_out, tm=8, tn=128, force_tiled=True
        )
    )
    assert jnp.allclose(out_t, ref, atol=5e-3, rtol=5e-3), "mismatch (tiled no-acc)"

    # 3) Tiled path WITH K-accumulation (grid_k > 1).
    in2, out2, b2sz = 384, 256, 32
    weight2, bias2 = init_params(kp2, in2, out2, divisor)
    x2 = jax.random.normal(kx2, (b2sz, in2), jnp.float32)
    w2_t, bias2_2d, n2 = prepare_params(weight2, bias2)
    out2_k = jax.block_until_ready(
        fused_linear_gelu_prepacked(
            x2, w2_t, bias2_2d, out_features=n2, tm=16, tn=128, tk=128,
            force_tiled=True,
        )
    )
    ref2 = ref_fn(x2, weight2, bias2)
    assert jnp.allclose(out2_k, ref2, atol=5e-3, rtol=5e-3), "mismatch (tiled acc)"

    print("KERNEL_OK")
</pallas_src>

<mosaic_0001>
module attributes {stable_mosaic.version = 11 : i64} {
  func.func @_single_block_kernel(%arg0: memref<16x128xf32, #tpu.memory_space<vmem>>, %arg1: memref<128x256xf32, #tpu.memory_space<vmem>>, %arg2: memref<1x256xf32, #tpu.memory_space<vmem>>, %arg3: memref<16x256xf32, #tpu.memory_space<vmem>>) attributes {dimension_semantics = [], scalar_prefetch = 0 : i64, scratch_operands = 0 : i64, tpu.core_type = #tpu.core_type<tc>} {
    %c0 = arith.constant 0 : index
    %c0_0 = arith.constant 0 : index
    %0 = vector.load %arg0[%c0, %c0_0] : memref<16x128xf32, #tpu.memory_space<vmem>>, vector<16x128xf32>
    %c0_1 = arith.constant 0 : index
    %c0_2 = arith.constant 0 : index
    %1 = vector.load %arg1[%c0_1, %c0_2] : memref<128x256xf32, #tpu.memory_space<vmem>>, vector<128x256xf32>
    %cst = arith.constant dense<0.000000e+00> : vector<16x256xf32>
    %2 = tpu.matmul %0, %1, %cst {dimension_numbers = #tpu.dot_dimension_numbers<[1], [0], [0], [1], [0, 0, 1, 1], [], []>} : vector<16x128xf32>, vector<128x256xf32>, vector<16x256xf32> -> vector<16x256xf32>
    %c0_3 = arith.constant 0 : index
    %c0_4 = arith.constant 0 : index
    %3 = vector.load %arg2[%c0_3, %c0_4] : memref<1x256xf32, #tpu.memory_space<vmem>>, vector<1x256xf32>
    %4 = vector.broadcast %3 : vector<1x256xf32> to vector<16x256xf32>
    %5 = arith.addf %2, %4 : vector<16x256xf32>
    %cst_5 = arith.constant -1.702000e+00 : f32
    %6 = vector.broadcast %cst_5 : f32 to vector<16x256xf32>
    %7 = arith.mulf %6, %5 : vector<16x256xf32>
    %8 = math.exp %7 : vector<16x256xf32>
    %cst_6 = arith.constant 1.000000e+00 : f32
    %9 = vector.broadcast %cst_6 : f32 to vector<16x256xf32>
    %10 = arith.addf %9, %8 : vector<16x256xf32>
    %11 = tpu.reciprocal %10 {approx = true} : vector<16x256xf32> -> vector<16x256xf32>
    %12 = arith.mulf %5, %11 : vector<16x256xf32>
    %c0_7 = arith.constant 0 : index
    %c0_8 = arith.constant 0 : index
    %13 = vector.load %arg3[%c0_7, %c0_8] : memref<16x256xf32, #tpu.memory_space<vmem>>, vector<16x256xf32>
    tpu.vector_store %arg3[%c0_7, %c0_8], %12 {strides = array<i32>} : memref<16x256xf32, #tpu.memory_space<vmem>>, vector<16x256xf32>,
    return
  }
}

</mosaic_0001>

<llo_original>
// kernel: fused_linear_gelu_prepacked.1
$region0: #{fused_linear_gelu_prepacked.1}
  #allocation0 [shape = 'u32[]', space=smem, size = 0x4, offset = 0x4, fixed_abs, tag = 'smem constant byte address 0x4 - core index']
  #allocation1 [shape = 'u32[144,128]{1,0:T(1,128)}', space=vmem, size = 0x12000, scoped, tag = 'internal scratch']
  %s0 = inlined_call_operand.hbm [shape: f32[16,128], index: 0, kind: input, shape index: {}]
  %s1 = inlined_call_operand.hbm [shape: f32[128,256], index: 1, kind: input, shape index: {}]
  %s2 = inlined_call_operand.vmem [shape: f32[1,256], index: 2, kind: input, shape index: {}]
  %s3 = inlined_call_operand.hbm [shape: f32[16,256], index: 3, kind: output, shape index: {}]
  %s4 = sld [smem:[#allocation0]]
  $region30: #{fused_linear_gelu_prepacked.1} parent=0
    _
  %s6 = ssub.s32 1, %s4
  %s7 = scalar_select 0, %s6, %s4
  $region1: #{fused_linear_gelu_prepacked.1} parent=0
    #allocation2 [shape = 'u8[8192]{0}', space=vmem, size = 0x2000, scoped, tag = 'input window, operand 0, single buffered']
    #allocation3 [shape = 's32[1]{0}', space=sflag, size = 0x4, scoped, tag = 'scoped memory for fused_linear_gelu_prepacked.1']
    #allocation4 [shape = 's32[1]{0}', space=sflag, size = 0x4, scoped, tag = 'scoped memory for fused_linear_gelu_prepacked.1']
    #allocation5 [shape = 'u8[131072]{0}', space=vmem, size = 0x20000, scoped, tag = 'input window, operand 1, single buffered']
    #allocation6 [shape = 's32[1]{0}', space=sflag, size = 0x4, scoped, tag = 'scoped memory for fused_linear_gelu_prepacked.1']
    #allocation7 [shape = 'u8[16384]{0}', space=vmem, size = 0x4000, scoped, tag = 'output window, operand 0, single buffered']
    %8 = vsyncpa [#allocation3], 0
    %9 = vsyncpa [#allocation6], 0
    %10 = vsyncpa [#allocation4], 0
    // Predicated region
    $region2: #{fused_linear_gelu_prepacked.1} parent=1 // pred_check
      _
    $region3: #{fused_linear_gelu_prepacked.1} parent=1 // pred_check_branch
      %12 = sbr.rel (0) target = $region5
    $region4: #{fused_linear_gelu_prepacked.1} parent=1 // pred_region
      %s14 = ssub.s32 256, 256
      %15 = vsyncadd [#allocation3], %s14
      %s16 = sshll.u32 [#allocation2], 4
      %s17 = int_to_ptr.vmem [resolvable:$true] %s16
      %22 = dma.hbm_to_vmem [thread:$0]  %s0, 256, %s17, [#allocation3], 128, 128, 8
    $region5: #{fused_linear_gelu_prepacked.1} parent=1 // pred_fallthru
      _
    // Predicated region
    $region6: #{fused_linear_gelu_prepacked.1} parent=1 // pred_check
      _
    $region7: #{fused_linear_gelu_prepacked.1} parent=1 // pred_check_branch
      %24 = sbr.rel (0) target = $region9
    $region8: #{fused_linear_gelu_prepacked.1} parent=1 // pred_region
      %s26 = ssub.s32 4096, 4096
      %27 = vsyncadd [#allocation6], %s26
      %s28 = sshll.u32 [#allocation5], 4
      %s29 = int_to_ptr.vmem [resolvable:$true] %s28
      %34 = dma.hbm_to_vmem [thread:$0]  %s1, 4096, %s29, [#allocation6], 256, 256, 16
    $region9: #{fused_linear_gelu_prepacked.1} parent=1 // pred_fallthru
      _
    // Predicated region
    $region10: #{fused_linear_gelu_prepacked.1} parent=1 // pred_check
      _
    $region11: #{fused_linear_gelu_prepacked.1} parent=1 // pred_check_branch
      %36 = sbr.rel (0) target = $region13
    $region12: #{fused_linear_gelu_prepacked.1} parent=1 // pred_region
      _
    $region13: #{fused_linear_gelu_prepacked.1} parent=1 // pred_fallthru
      _
    // Predicated region
    $region14: #{fused_linear_gelu_prepacked.1} parent=1 // pred_check
      _
    $region15: #{fused_linear_gelu_prepacked.1} parent=1 // pred_check_branch
      %38 = sbr.rel (0) target = $region17
    $region16: #{fused_linear_gelu_prepacked.1} parent=1 // pred_region
      %39 = dma.done [#allocation3], 256
    $region17: #{fused_linear_gelu_prepacked.1} parent=1 // pred_fallthru
      _
    // Predicated region
    $region18: #{fused_linear_gelu_prepacked.1} parent=1 // pred_check
      _
    $region19: #{fused_linear_gelu_prepacked.1} parent=1 // pred_check_branch
      %41 = sbr.rel (0) target = $region21
    $region20: #{fused_linear_gelu_prepacked.1} parent=1 // pred_region
      %42 = dma.done [#allocation6], 4096
    $region21: #{fused_linear_gelu_prepacked.1} parent=1 // pred_fallthru
      _
    %v43 = vld [vmem:[#allocation2] sm:$0xff]
    %v44 = vld [vmem:[#allocation2 + $0x8] sm:$0xff]
    %v45 = vld [vmem:[#allocation5] sm:$0xff]
    %v46 = vld [vmem:[#allocation5 + $0x8] sm:$0xff]
    %v47 = vld [vmem:[#allocation5 + $0x10] sm:$0xff]
    %v48 = vld [vmem:[#allocation5 + $0x18] sm:$0xff]
    %v49 = vld [vmem:[#allocation5 + $0x20] sm:$0xff]
    %v50 = vld [vmem:[#allocation5 + $0x28] sm:$0xff]
    %v51 = vld [vmem:[#allocation5 + $0x30] sm:$0xff]
    %v52 = vld [vmem:[#allocation5 + $0x38] sm:$0xff]
    %v53 = vld [vmem:[#allocation5 + $0x40] sm:$0xff]
    %v54 = vld [vmem:[#allocation5 + $0x48] sm:$0xff]
    %v55 = vld [vmem:[#allocation5 + $0x50] sm:$0xff]
    %v56 = vld [vmem:[#allocation5 + $0x58] sm:$0xff]
    %v57 = vld [vmem:[#allocation5 + $0x60] sm:$0xff]
    %v58 = vld [vmem:[#allocation5 + $0x68] sm:$0xff]
    %v59 = vld [vmem:[#allocation5 + $0x70] sm:$0xff]
    %v60 = vld [vmem:[#allocation5 + $0x78] sm:$0xff]
    %v61 = vld [vmem:[#allocation5 + $0x80] sm:$0xff]
    %v62 = vld [vmem:[#allocation5 + $0x88] sm:$0xff]
    %v63 = vld [vmem:[#allocation5 + $0x90] sm:$0xff]
    %v64 = vld [vmem:[#allocation5 + $0x98] sm:$0xff]
    %v65 = vld [vmem:[#allocation5 + $0xa0] sm:$0xff]
    %v66 = vld [vmem:[#allocation5 + $0xa8] sm:$0xff]
    %v67 = vld [vmem:[#allocation5 + $0xb0] sm:$0xff]
    %v68 = vld [vmem:[#allocation5 + $0xb8] sm:$0xff]
    %v69 = vld [vmem:[#allocation5 + $0xc0] sm:$0xff]
    %v70 = vld [vmem:[#allocation5 + $0xc8] sm:$0xff]
    %v71 = vld [vmem:[#allocation5 + $0xd0] sm:$0xff]
    %v72 = vld [vmem:[#allocation5 + $0xd8] sm:$0xff]
    %v73 = vld [vmem:[#allocation5 + $0xe0] sm:$0xff]
    %v74 = vld [vmem:[#allocation5 + $0xe8] sm:$0xff]
    %v75 = vld [vmem:[#allocation5 + $0xf0] sm:$0xff]
    %v76 = vld [vmem:[#allocation5 + $0xf8] sm:$0xff]
    %v77 = vld [vmem:[%s2] sm:$0x3]
    %v79 = vlaneseq
    %v80 = vshrl.u32 %v79, 7
    %v81 = vsub.s32 0, %v80
    %v82 = vrot.slane %v77, %v81
    %v83 = vlaneseq
    %v84 = vshrl.u32 %v83, 7
    %v85 = vsub.s32 1, %v84
    %v86 = vrot.slane %v77, %v85
    %89 = vmatprep.subr.mxu0 %v46
    %90 = vmatpush1.msra.mxu0 %v45
    %91 = vmatprep.subr.mxu0 %v48
    %92 = vmatpush1.msra.mxu0 %v47
    %93 = vmatprep.subr.mxu0 %v50
    %94 = vmatpush1.msra.mxu0 %v49
    %95 = vmatprep.subr.mxu0 %v52
    %96 = vmatpush1.msra.mxu0 %v51
    %97 = vmatprep.subr.mxu0 %v54
    %98 = vmatpush1.msra.mxu0 %v53
    %99 = vmatprep.subr.mxu0 %v56
    %100 = vmatpush1.msra.mxu0 %v55
    %101 = vmatprep.subr.mxu0 %v58
    %102 = vmatpush1.msra.mxu0 %v57
    %103 = vmatprep.subr.mxu0 %v60
    %104 = vmatpush1.msra.mxu0 %v59
    %105 = vmatprep.subr.mxu0 %v62
    %106 = vmatpush1.msra.mxu0 %v61
    %107 = vmatprep.subr.mxu0 %v64
    %108 = vmatpush1.msra.mxu0 %v63
    %109 = vmatprep.subr.mxu0 %v66
    %110 = vmatpush1.msra.mxu0 %v65
    %111 = vmatprep.subr.mxu0 %v68
    %112 = vmatpush1.msra.mxu0 %v67
    %113 = vmatprep.subr.mxu0 %v70
    %114 = vmatpush1.msra.mxu0 %v69
    %115 = vmatprep.subr.mxu0 %v72
    %116 = vmatpush1.msra.mxu0 %v71
    %117 = vmatprep.subr.mxu0 %v74
    %118 = vmatpush1.msra.mxu0 %v73
    %119 = vmatprep.subr.mxu0 %v76
    %120 = vmatpush1.msra.mxu0 %v75
    %121 = vmatprep.subr.mxu0 0.0
    %122 = vmatpush1.msra.mxu0 0.0
    %123 = vmatprep.subr.mxu0 0.0
    %124 = vmatpush1.msra.mxu0 0.0
    %125 = vmatprep.subr.mxu0 0.0
    %126 = vmatpush1.msra.mxu0 0.0
    %127 = vmatprep.subr.mxu0 0.0
    %128 = vmatpush1.msra.mxu0 0.0
    %129 = vmatprep.subr.mxu0 0.0
    %130 = vmatpush1.msra.mxu0 0.0
    %131 = vmatprep.subr.mxu0 0.0
    %132 = vmatpush1.msra.mxu0 0.0
    %133 = vmatprep.subr.mxu0 0.0
    %134 = vmatpush1.msra.mxu0 0.0
    %135 = vmatprep.subr.mxu0 0.0
    %136 = vmatpush1.msra.mxu0 0.0
    %137 = vmatprep.subr.mxu0 0.0
    %138 = vmatpush1.msra.mxu0 0.0
    %139 = vmatprep.subr.mxu0 0.0
    %140 = vmatpush1.msra.mxu0 0.0
    %141 = vmatprep.subr.mxu0 0.0
    %142 = vmatpush1.msra.mxu0 0.0
    %143 = vmatprep.subr.mxu0 0.0
    %144 = vmatpush1.msra.mxu0 0.0
    %145 = vmatprep.subr.mxu0 0.0
    %146 = vmatpush1.msra.mxu0 0.0
    %147 = vmatprep.subr.mxu0 0.0
    %148 = vmatpush1.msra.mxu0 0.0
    %149 = vmatprep.subr.mxu0 0.0
    %150 = vmatpush1.msra.mxu0 0.0
    %151 = vmatprep.subr.mxu0 0.0
    %152 = vmatpush1.msra.mxu0 0.0
    %153 = vmatprep.mubr.f32.mxu0 0.0
    %154 = vmatmul.mubr.f32.gmra.mrb[0].mxu0 %v43
    %v155 = vpop.f32.mrb[0].mxu0
    %v156 = vadd.f32 %v82, %v155
    %v157 = vpop.f32.mrb[0].mxu0
    %v158 = vadd.f32 %v86, %v157
    %159 = vmatprep.mubr.f32.mxu0 0.0
    %160 = vmatmul.mubr.f32.gmra.mrb[0].mxu0 %v44
    %v161 = vpop.f32.mrb[0].mxu0
    %v162 = vadd.f32 %v82, %v161
    %v163 = vpop.f32.mrb[0].mxu0
    %v164 = vadd.f32 %v86, %v163
    %165 = vdwg.mxu0
    %v166 = vmul.f32 %v156, -1.702
    %v167 = vmul.f32 %v158, -1.702
    %v168 = vmul.f32 %v162, -1.702
    %v169 = vmul.f32 %v164, -1.702
    %v170 = vmul.f32 %v166, 1.442695
    %v171 = vpow.pop %v170
    %v172 = vmul.f32 %v167, 1.442695
    %v173 = vpow.pop %v172
    %v174 = vmul.f32 %v168, 1.442695
    %v175 = vpow.pop %v174
    %v176 = vmul.f32 %v169, 1.442695
    %v177 = vpow.pop %v176
    %v178 = vadd.f32 %v171, 1.0
    %v179 = vadd.f32 %v173, 1.0
    %v180 = vadd.f32 %v175, 1.0
    %v181 = vadd.f32 %v177, 1.0
    %v182 = vrcp.pop %v178
    %v183 = vrcp.pop %v179
    %v184 = vrcp.pop %v180
    %v185 = vrcp.pop %v181
    %v186 = vmul.f32 %v156, %v182
    %v187 = vmul.f32 %v158, %v183
    %v188 = vmul.f32 %v162, %v184
    %v189 = vmul.f32 %v164, %v185
    %190 = vst [vmem:[#allocation7] sm:$0xff] %v186
    %191 = vst [vmem:[#allocation7 + $0x8] sm:$0xff] %v187
    %192 = vst [vmem:[#allocation7 + $0x10] sm:$0xff] %v188
    %193 = vst [vmem:[#allocation7 + $0x18] sm:$0xff] %v189
    // Predicated region
    $region22: #{fused_linear_gelu_prepacked.1} parent=1 // pred_check
      _
    $region23: #{fused_linear_gelu_prepacked.1} parent=1 // pred_check_branch
      %195 = sbr.rel (0) target = $region25
    $region24: #{fused_linear_gelu_prepacked.1} parent=1 // pred_region
      %s197 = ssub.s32 512, 512
      %198 = vsyncadd [#allocation4], %s197
      %s199 = sshll.u32 [#allocation7], 4
      %s200 = int_to_ptr.vmem [resolvable:$true] %s199
      %205 = dma.vmem_to_hbm [thread:$0]  %s200, 512, %s3, [#allocation4], 256, 256, 16
    $region25: #{fused_linear_gelu_prepacked.1} parent=1 // pred_fallthru
      _
    // Predicated region
    $region26: #{fused_linear_gelu_prepacked.1} parent=1 // pred_check
      _
    $region27: #{fused_linear_gelu_prepacked.1} parent=1 // pred_check_branch
      %207 = sbr.rel (0) target = $region29
    $region28: #{fused_linear_gelu_prepacked.1} parent=1 // pred_region
      %208 = dma.done [#allocation4], 512
    $region29: #{fused_linear_gelu_prepacked.1} parent=1 // pred_fallthru
      _
    %209 = vsyncpa [#allocation3], 1
    %210 = vsyncpa [#allocation6], 1
    %211 = vsyncpa [#allocation4], 1

</llo_original>
